<compile_context>
chip_gen: v7x
topology: tpu7x:2x2x1
jax: 0.10.0
libtpu: 0.0.40
codegen_flags: <defaults>
</compile_context>

<pallas_src>
import functools

import jax
import jax.numpy as jnp
import numpy as np
from jax.experimental import pallas as pl
from jax.experimental.pallas import tpu as pltpu


# Tile caps.  TM_MAX is a multiple of 16 (bf16 sublane packing), TK_MAX a multiple of 128.
# Chosen conservatively for v7x (64 MiB VMEM); still ~4x larger blocks than before, which is
# most of the HBM-streaming win on v5e/v6e as well.
TM_MAX = 512   # dst-row tile (sublane axis)
TK_MAX = 1024  # src-node reduction tile (lane axis of A)


def _round_up(x, m):
    return (x + m - 1) // m * m


def _layer_tiling(n_dst, n_src):
    """Tile sizes and padded extents for one block (A has shape (n_dst, n_src))."""
    tm = min(TM_MAX, _round_up(n_dst, 16))    # multiples of 16: native bf16 packed layout
    tk = min(TK_MAX, _round_up(n_src, 128))   # lane-dense A tiles
    n_dst_p = _round_up(n_dst, tm)
    n_src_p = _round_up(n_src, tk)
    return tm, tk, n_dst_p, n_src_p


def _pad2d(x, rows, cols):
    r, c = x.shape
    if r > rows:
        x = x[:rows]
    if c > cols:
        x = x[:, :cols]
    pr, pc = rows - x.shape[0], cols - x.shape[1]
    if pr or pc:
        x = jnp.pad(x, ((0, pr), (0, pc)))
    return x


def _sage_layer_kernel(a_ref, hsrc_ref, hdst_ref, ws_ref, wn_ref, b_ref,
                       out_ref, acc_ref, *, apply_relu):
    k = pl.program_id(1)

    @pl.when(k == 0)
    def _():
        acc_ref[...] = jnp.zeros_like(acc_ref)

    # Neighbor-mean aggregation (A rows pre-normalized on the host): bf16 MXU, f32 accum.
    acc_ref[...] += jnp.dot(a_ref[...], hsrc_ref[...],
                            preferred_element_type=jnp.float32)

    @pl.when(k == pl.num_programs(1) - 1)
    def _():
        # Projection as two bf16 MXU contractions (no in-kernel concatenate):
        #   out = h_dst @ W_self + (A @ h_src) @ W_neigh + b   [+ ReLU]
        out = jnp.dot(hdst_ref[...], ws_ref[...],
                      preferred_element_type=jnp.float32)
        out += jnp.dot(acc_ref[...].astype(jnp.bfloat16), wn_ref[...],
                       preferred_element_type=jnp.float32)
        out += b_ref[...]
        if apply_relu:
            out = jnp.maximum(out, 0.0)
        out_ref[...] = out.astype(out_ref.dtype)


def sage_conv_layer(block, h, w_self, w_neigh, bias, *, apply_relu, out_dtype):
    """One SAGEConv('mean') layer.  `block["a"]` is the padded bf16, row-normalized A.

    Returns the padded output (n_dst_p, f_out_p) in `out_dtype`; valid region is
    [:n_dst, :d_out].  Rows/cols beyond the valid region are only ever multiplied by the
    zero-padded parts of A / W in later layers, so they never contaminate real outputs.
    """
    a_p = block["a"]
    n_dst, n_src = block["n_dst"], block["n_src"]
    tm, tk, n_dst_p, n_src_p = _layer_tiling(n_dst, n_src)
    assert a_p.shape == (n_dst_p, n_src_p), (a_p.shape, (n_dst_p, n_src_p))

    d_in, d_out = w_self.shape
    f_in = _round_up(d_in, 128)
    f_out = _round_up(d_out, 128)

    # h carried in bf16, feature-padded between layers; pad rows so both the src (k, 0)
    # tiles and the dst (i, 0) prefix tiles index fully in-bounds.
    rows_p = max(n_src_p, n_dst_p)
    h_p = _pad2d(h.astype(jnp.bfloat16), rows_p, f_in)

    ws_p = _pad2d(w_self, f_in, f_out).astype(jnp.bfloat16)
    wn_p = _pad2d(w_neigh, f_in, f_out).astype(jnp.bfloat16)
    b_p = _pad2d(bias.reshape(1, -1), 1, f_out).astype(jnp.float32)

    grid = (n_dst_p // tm, n_src_p // tk)
    kernel = functools.partial(_sage_layer_kernel, apply_relu=apply_relu)
    out_itemsize = jnp.dtype(out_dtype).itemsize

    flops = int(2.0 * n_dst_p * n_src_p * f_in          # aggregation A @ h_src
                + 4.0 * n_dst_p * f_in * f_out)          # two projection matmuls
    bytes_accessed = int(a_p.size * 2
                         + grid[0] * n_src_p * f_in * 2  # h_src re-read per row tile
                         + n_dst_p * f_in * 2            # h_dst
                         + (ws_p.size + wn_p.size) * 2 + b_p.size * 4
                         + n_dst_p * f_out * out_itemsize)

    # VMEM: double-buffered bf16 tiles + f32 accumulator; clamp to a sane scoped limit.
    vmem_need = 2 * (tm * tk * 2 + tk * f_in * 2 + tm * f_in * 2
                     + 2 * f_in * f_out * 2 + f_out * 4
                     + tm * f_out * out_itemsize) + tm * f_in * 4
    vmem_limit = min(max(int(vmem_need * 1.5) + (2 << 20), 16 * 1024 * 1024),
                     100 * 1024 * 1024)

    out = pl.pallas_call(
        kernel,
        out_shape=jax.ShapeDtypeStruct((n_dst_p, f_out), out_dtype),
        grid_spec=pltpu.PrefetchScalarGridSpec(
            num_scalar_prefetch=0,
            grid=grid,
            in_specs=[
                pl.BlockSpec((tm, tk), lambda i, k: (i, k)),        # A tile
                pl.BlockSpec((tk, f_in), lambda i, k: (k, 0)),      # h_src tile (reduction)
                pl.BlockSpec((tm, f_in), lambda i, k: (i, 0)),      # h_dst tile (row prefix)
                pl.BlockSpec((f_in, f_out), lambda i, k: (0, 0)),   # W_self (pinned)
                pl.BlockSpec((f_in, f_out), lambda i, k: (0, 0)),   # W_neigh (pinned)
                pl.BlockSpec((1, f_out), lambda i, k: (0, 0)),      # bias (pinned)
            ],
            out_specs=pl.BlockSpec((tm, f_out), lambda i, k: (i, 0)),
            scratch_shapes=[pltpu.VMEM((tm, f_in), jnp.float32)],
        ),
        compiler_params=pltpu.CompilerParams(
            dimension_semantics=("parallel", "arbitrary"),
            vmem_limit_bytes=vmem_limit,
        ),
        cost_estimate=pl.CostEstimate(
            flops=flops, transcendentals=0, bytes_accessed=bytes_accessed),
    )(a_p, h_p, h_p, ws_p, wn_p, b_p)

    return out


def sage_forward(blocks, x, params):
    """Mirrors SAGE.forward: loop over (layer, block); h_dst = h[:n_dst] inside each layer.

    Intermediate activations stay bf16 and feature-padded between layers; only the final
    layer emits f32 and is sliced back to the logical (n_dst, n_classes) shape.
    """
    n_layers = len(params)
    h = x
    for l, (block, p) in enumerate(zip(blocks, params)):
        last = (l == n_layers - 1)
        h = sage_conv_layer(block, h, p["w_self"], p["w_neigh"], p["b"],
                            apply_relu=not last,
                            out_dtype=jnp.float32 if last else jnp.bfloat16)
        # dropout(p=0.0) == identity
    n_dst_last = blocks[-1]["n_dst"]
    n_classes = params[-1]["w_self"].shape[1]
    return h[:n_dst_last, :n_classes]


def sage_forward_ref(blocks, x, params):
    """Pure-JAX f32 reference for verification."""
    n_layers = len(params)
    h = x
    for l, (block, p) in enumerate(zip(blocks, params)):
        a = block["a_dense"]
        n_dst, n_src = block["n_dst"], block["n_src"]
        h_dst = h[:n_dst]
        h = h_dst @ p["w_self"] + (a @ h[:n_src]) @ p["w_neigh"] + p["b"]
        if l != n_layers - 1:
            h = jnp.maximum(h, 0.0)
    return h


def make_block_adjacency(key, n_dst, n_src, p_edge=0.3):
    """Dense random DGL-style block adjacency, row-normalized for 'mean' aggregation.

    The kernel-facing copy is materialized once, up front, in the padded bf16 layout the
    kernel streams (pad + cast fused into the producer); an f32 dense copy is kept only
    for the reference check.
    """
    a = (jax.random.uniform(key, (n_dst, n_src)) < p_edge).astype(jnp.float32)
    deg = jnp.clip(a.sum(axis=1, keepdims=True), 1.0, None)
    a = a / deg
    _, _, n_dst_p, n_src_p = _layer_tiling(n_dst, n_src)
    a_p = jnp.pad(a, ((0, n_dst_p - n_dst), (0, n_src_p - n_src))).astype(jnp.bfloat16)
    return {"a": a_p, "n_dst": n_dst, "n_src": n_src, "a_dense": a}


def init_sage_params(key, in_feats, n_hidden, n_classes, n_layers):
    """Deterministic params for n_layers SAGEConv layers (mean aggregator)."""
    dims = [in_feats] + [n_hidden] * (n_layers - 1) + [n_classes]
    params = []
    for l in range(n_layers):
        key, k1, k2 = jax.random.split(key, 3)
        d_in, d_out = dims[l], dims[l + 1]
        scale = 1.0 / np.sqrt(d_in)
        params.append({
            "w_self": jax.random.normal(k1, (d_in, d_out), jnp.float32) * scale,
            "w_neigh": jax.random.normal(k2, (d_in, d_out), jnp.float32) * scale,
            "b": jnp.zeros((1, d_out), jnp.float32),
        })
    return params


if __name__ == "__main__":
    key = jax.random.PRNGKey(0)

    # SAGE(in_feats, n_hidden, n_classes, n_layers=2, relu, dropout=0.0) on two sampled blocks.
    n_layers = 2
    in_feats, n_hidden, n_classes = 16, 32, 8
    n_src0, n_dst0, n_dst1 = 64, 32, 16  # block0: 64 src -> 32 dst; block1: 32 src -> 16 dst

    k_a0, k_a1, k_x, k_p = jax.random.split(key, 4)
    blocks = [
        make_block_adjacency(k_a0, n_dst0, n_src0),   # block 0
        make_block_adjacency(k_a1, n_dst1, n_dst0),   # block 1 (src == dst of block 0)
    ]
    x = jax.random.normal(k_x, (n_src0, in_feats), jnp.float32)
    params = init_sage_params(k_p, in_feats, n_hidden, n_classes, n_layers)

    out = sage_forward(blocks, x, params)
    out = jax.block_until_ready(out)

    ref = sage_forward_ref(blocks, x, params)
    # Tolerance loosened: A, h, and weights are streamed in bf16 (f32 MXU accumulation),
    # and intermediate activations are carried in bf16 between layers.
    np.testing.assert_allclose(np.asarray(out), np.asarray(ref), rtol=5e-2, atol=5e-2)
    assert out.shape == (n_dst1, n_classes)

    print("KERNEL_OK")
</pallas_src>

<mosaic_0001>
module attributes {stable_mosaic.version = 11 : i64} {
  func.func @_sage_layer_kernel(%arg0: i32, %arg1: i32, %arg2: memref<32x128xbf16, #tpu.memory_space<vmem>>, %arg3: memref<128x128xbf16, #tpu.memory_space<vmem>>, %arg4: memref<32x128xbf16, #tpu.memory_space<vmem>>, %arg5: memref<128x128xbf16, #tpu.memory_space<vmem>>, %arg6: memref<128x128xbf16, #tpu.memory_space<vmem>>, %arg7: memref<1x128xf32, #tpu.memory_space<vmem>>, %arg8: memref<32x128xbf16, #tpu.memory_space<vmem>>, %arg9: memref<32x128xf32, #tpu.memory_space<vmem>>) attributes {dimension_semantics = [#tpu.dimension_semantics<parallel>, #tpu.dimension_semantics<arbitrary>], iteration_bounds = array<i64: 1, 1>, scalar_prefetch = 0 : i64, scratch_operands = 1 : i64, tpu.core_type = #tpu.core_type<tc>, window_params = [{transform_indices = @transform_0, window_bounds = array<i64: 32, 128>}, {transform_indices = @transform_1, window_bounds = array<i64: 128, 128>}, {transform_indices = @transform_2, window_bounds = array<i64: 32, 128>}, {pipeline_mode = #tpu.pipeline_mode<synchronous>, transform_indices = @transform_3, window_bounds = array<i64: 128, 128>}, {pipeline_mode = #tpu.pipeline_mode<synchronous>, transform_indices = @transform_4, window_bounds = array<i64: 128, 128>}, {pipeline_mode = #tpu.pipeline_mode<synchronous>, transform_indices = @transform_5, window_bounds = array<i64: 1, 128>}, {transform_indices = @transform_6, window_bounds = array<i64: 32, 128>}]} {
    %c0_i32 = arith.constant 0 : i32
    %0 = arith.cmpi eq, %arg1, %c0_i32 : i32
    %1 = arith.extui %0 : i1 to i32
    %c0_i32_0 = arith.constant 0 : i32
    %2 = arith.cmpi ne, %1, %c0_i32_0 : i32
    scf.if %2 {
      %cst_10 = arith.constant 0.000000e+00 : f32
      %12 = vector.broadcast %cst_10 : f32 to vector<32x128xf32>
      %c0_11 = arith.constant 0 : index
      %c0_12 = arith.constant 0 : index
      %13 = vector.load %arg9[%c0_11, %c0_12] : memref<32x128xf32, #tpu.memory_space<vmem>>, vector<32x128xf32>
      tpu.vector_store %arg9[%c0_11, %c0_12], %12 {strides = array<i32>} : memref<32x128xf32, #tpu.memory_space<vmem>>, vector<32x128xf32>,
    } else {
    }
    %c0 = arith.constant 0 : index
    %c0_1 = arith.constant 0 : index
    %3 = vector.load %arg9[%c0, %c0_1] : memref<32x128xf32, #tpu.memory_space<vmem>>, vector<32x128xf32>
    %c0_2 = arith.constant 0 : index
    %c0_3 = arith.constant 0 : index
    %4 = vector.load %arg2[%c0_2, %c0_3] : memref<32x128xbf16, #tpu.memory_space<vmem>>, vector<32x128xbf16>
    %c0_4 = arith.constant 0 : index
    %c0_5 = arith.constant 0 : index
    %5 = vector.load %arg3[%c0_4, %c0_5] : memref<128x128xbf16, #tpu.memory_space<vmem>>, vector<128x128xbf16>
    %cst = arith.constant dense<0.000000e+00> : vector<32x128xf32>
    %6 = tpu.matmul %4, %5, %cst {dimension_numbers = #tpu.dot_dimension_numbers<[1], [0], [0], [1], [0, 0, 1, 1], [], []>} : vector<32x128xbf16>, vector<128x128xbf16>, vector<32x128xf32> -> vector<32x128xf32>
    %7 = arith.addf %3, %6 : vector<32x128xf32>
    %c0_6 = arith.constant 0 : index
    %c0_7 = arith.constant 0 : index
    %8 = vector.load %arg9[%c0_6, %c0_7] : memref<32x128xf32, #tpu.memory_space<vmem>>, vector<32x128xf32>
    tpu.vector_store %arg9[%c0_6, %c0_7], %7 {strides = array<i32>} : memref<32x128xf32, #tpu.memory_space<vmem>>, vector<32x128xf32>,
    %c0_i32_8 = arith.constant 0 : i32
    %9 = arith.cmpi eq, %arg1, %c0_i32_8 : i32
    %10 = arith.extui %9 : i1 to i32
    %c0_i32_9 = arith.constant 0 : i32
    %11 = arith.cmpi ne, %10, %c0_i32_9 : i32
    scf.if %11 {
      %c0_10 = arith.constant 0 : index
      %c0_11 = arith.constant 0 : index
      %12 = vector.load %arg4[%c0_10, %c0_11] : memref<32x128xbf16, #tpu.memory_space<vmem>>, vector<32x128xbf16>
      %c0_12 = arith.constant 0 : index
      %c0_13 = arith.constant 0 : index
      %13 = vector.load %arg5[%c0_12, %c0_13] : memref<128x128xbf16, #tpu.memory_space<vmem>>, vector<128x128xbf16>
      %cst_14 = arith.constant dense<0.000000e+00> : vector<32x128xf32>
      %14 = tpu.matmul %12, %13, %cst_14 {dimension_numbers = #tpu.dot_dimension_numbers<[1], [0], [0], [1], [0, 0, 1, 1], [], []>} : vector<32x128xbf16>, vector<128x128xbf16>, vector<32x128xf32> -> vector<32x128xf32>
      %c0_15 = arith.constant 0 : index
      %c0_16 = arith.constant 0 : index
      %15 = vector.load %arg9[%c0_15, %c0_16] : memref<32x128xf32, #tpu.memory_space<vmem>>, vector<32x128xf32>
      %16 = arith.truncf %15 : vector<32x128xf32> to vector<32x128xbf16>
      %c0_17 = arith.constant 0 : index
      %c0_18 = arith.constant 0 : index
      %17 = vector.load %arg6[%c0_17, %c0_18] : memref<128x128xbf16, #tpu.memory_space<vmem>>, vector<128x128xbf16>
      %cst_19 = arith.constant dense<0.000000e+00> : vector<32x128xf32>
      %18 = tpu.matmul %16, %17, %cst_19 {dimension_numbers = #tpu.dot_dimension_numbers<[1], [0], [0], [1], [0, 0, 1, 1], [], []>} : vector<32x128xbf16>, vector<128x128xbf16>, vector<32x128xf32> -> vector<32x128xf32>
      %19 = arith.addf %14, %18 : vector<32x128xf32>
      %c0_20 = arith.constant 0 : index
      %c0_21 = arith.constant 0 : index
      %20 = vector.load %arg7[%c0_20, %c0_21] : memref<1x128xf32, #tpu.memory_space<vmem>>, vector<1x128xf32>
      %21 = vector.broadcast %20 : vector<1x128xf32> to vector<32x128xf32>
      %22 = arith.addf %19, %21 : vector<32x128xf32>
      %cst_22 = arith.constant 0.000000e+00 : f32
      %23 = vector.broadcast %cst_22 : f32 to vector<32x128xf32>
      %24 = arith.maximumf %22, %23 : vector<32x128xf32>
      %25 = arith.truncf %24 : vector<32x128xf32> to vector<32x128xbf16>
      %c0_23 = arith.constant 0 : index
      %c0_24 = arith.constant 0 : index
      %26 = vector.load %arg8[%c0_23, %c0_24] : memref<32x128xbf16, #tpu.memory_space<vmem>>, vector<32x128xbf16>
      tpu.vector_store %arg8[%c0_23, %c0_24], %25 {strides = array<i32>} : memref<32x128xbf16, #tpu.memory_space<vmem>>, vector<32x128xbf16>,
    } else {
    }
    return
  }
  func.func @transform_0(%arg0: i32, %arg1: i32) -> (i32, i32) {
    %c0_i32 = arith.constant 0 : i32
    return %arg0, %arg1 : i32, i32
  }
  func.func @transform_1(%arg0: i32, %arg1: i32) -> (i32, i32) {
    %c0_i32 = arith.constant 0 : i32
    %c0_i32_0 = arith.constant 0 : i32
    return %arg1, %c0_i32 : i32, i32
  }
  func.func @transform_2(%arg0: i32, %arg1: i32) -> (i32, i32) {
    %c0_i32 = arith.constant 0 : i32
    %c0_i32_0 = arith.constant 0 : i32
    return %arg0, %c0_i32 : i32, i32
  }
  func.func @transform_3(%arg0: i32, %arg1: i32) -> (i32, i32) {
    %c0_i32 = arith.constant 0 : i32
    %c0_i32_0 = arith.constant 0 : i32
    %c0_i32_1 = arith.constant 0 : i32
    return %c0_i32, %c0_i32_0 : i32, i32
  }
  func.func @transform_4(%arg0: i32, %arg1: i32) -> (i32, i32) {
    %c0_i32 = arith.constant 0 : i32
    %c0_i32_0 = arith.constant 0 : i32
    %c0_i32_1 = arith.constant 0 : i32
    return %c0_i32, %c0_i32_0 : i32, i32
  }
  func.func @transform_5(%arg0: i32, %arg1: i32) -> (i32, i32) {
    %c0_i32 = arith.constant 0 : i32
    %c0_i32_0 = arith.constant 0 : i32
    %c0_i32_1 = arith.constant 0 : i32
    return %c0_i32, %c0_i32_0 : i32, i32
  }
  func.func @transform_6(%arg0: i32, %arg1: i32) -> (i32, i32) {
    %c0_i32 = arith.constant 0 : i32
    %c0_i32_0 = arith.constant 0 : i32
    return %arg0, %c0_i32 : i32, i32
  }
}

</mosaic_0001>

<llo_original>
// kernel: tpu_custom_call.1
$region0: #{tpu_custom_call.1}
  #allocation0 [shape = 'u32[]', space=smem, size = 0x4, offset = 0x4, fixed_abs, tag = 'smem constant byte address 0x4 - core index']
  #allocation1 [shape = 'u32[144,128]{1,0:T(1,128)}', space=vmem, size = 0x12000, scoped, tag = 'internal scratch']
  #allocation2 [shape = 'f32[32,128]{1,0:T(8,128)}', space=vmem, size = 0x4000, scoped, tag = 'scratch operand']
  %s0 = inlined_call_operand.hbm [shape: bf16[32,128], index: 0, kind: input, shape index: {}]
  %s1 = inlined_call_operand.hbm [shape: bf16[128,128], index: 1, kind: input, shape index: {}]
  %s2 = inlined_call_operand.hbm [shape: bf16[128,128], index: 2, kind: input, shape index: {}]
  %s3 = inlined_call_operand.hbm [shape: bf16[128,128], index: 3, kind: input, shape index: {}]
  %s4 = inlined_call_operand.hbm [shape: bf16[128,128], index: 4, kind: input, shape index: {}]
  %s5 = inlined_call_operand.vmem [shape: f32[1,128], index: 5, kind: input, shape index: {}]
  %s6 = inlined_call_operand.hbm [shape: bf16[32,128], index: 6, kind: output, shape index: {}]
  %s7 = sld [smem:[#allocation0]]
  $region62: #{tpu_custom_call.1} parent=0
    _
  %s9 = ssub.s32 1, %s7
  %s10 = scalar_select 0, %s9, %s7
  $region1: #{tpu_custom_call.1} parent=0
    #allocation3 [shape = 'u8[8192]{0}', space=vmem, size = 0x2000, scoped, tag = 'input window, operand 0, single buffered']
    #allocation4 [shape = 's32[1]{0}', space=sflag, size = 0x4, scoped, tag = 'scoped memory for tpu_custom_call.1']
    #allocation5 [shape = 's32[1]{0}', space=sflag, size = 0x4, scoped, tag = 'scoped memory for tpu_custom_call.1']
    #allocation6 [shape = 'u8[32768]{0}', space=vmem, size = 0x8000, scoped, tag = 'input window, operand 1, single buffered']
    #allocation7 [shape = 's32[1]{0}', space=sflag, size = 0x4, scoped, tag = 'scoped memory for tpu_custom_call.1']
    #allocation8 [shape = 'u8[8192]{0}', space=vmem, size = 0x2000, scoped, tag = 'input window, operand 2, single buffered']
    #allocation9 [shape = 'u8[32768]{0}', space=vmem, size = 0x8000, scoped, tag = 'input window, operand 3, single buffered']
    #allocation10 [shape = 's32[1]{0}', space=sflag, size = 0x4, scoped, tag = 'scoped memory for tpu_custom_call.1']
    #allocation11 [shape = 'u8[32768]{0}', space=vmem, size = 0x8000, scoped, tag = 'input window, operand 4, single buffered']
    #allocation12 [shape = 'u8[8192]{0}', space=vmem, size = 0x2000, scoped, tag = 'output window, operand 0, single buffered']
    %11 = vsyncpa [#allocation4], 0
    %12 = vsyncpa [#allocation7], 0
    %13 = vsyncpa [#allocation10], 0
    %14 = vsyncpa [#allocation5], 0
    // Predicated region
    $region2: #{tpu_custom_call.1} parent=1 // pred_check
      _
    $region3: #{tpu_custom_call.1} parent=1 // pred_check_branch
      %16 = sbr.rel (0) target = $region5
    $region4: #{tpu_custom_call.1} parent=1 // pred_region
      %s18 = ssub.s32 256, 256
      %19 = vsyncadd [#allocation4], %s18
      %s20 = sshll.u32 [#allocation3], 4
      %s21 = int_to_ptr.vmem [resolvable:$true] %s20
      %26 = dma.hbm_to_vmem [thread:$0]  %s0, 256, %s21, [#allocation4], 64, 64, 4
    $region5: #{tpu_custom_call.1} parent=1 // pred_fallthru
      _
    // Predicated region
    $region6: #{tpu_custom_call.1} parent=1 // pred_check
      _
    $region7: #{tpu_custom_call.1} parent=1 // pred_check_branch
      %28 = sbr.rel (0) target = $region9
    $region8: #{tpu_custom_call.1} parent=1 // pred_region
      %s30 = ssub.s32 1024, 1024
      %31 = vsyncadd [#allocation7], %s30
      %s32 = sshll.u32 [#allocation6], 4
      %s33 = int_to_ptr.vmem [resolvable:$true] %s32
      %38 = dma.hbm_to_vmem [thread:$0]  %s1, 1024, %s33, [#allocation7], 64, 64, 4
    $region9: #{tpu_custom_call.1} parent=1 // pred_fallthru
      _
    // Predicated region
    $region10: #{tpu_custom_call.1} parent=1 // pred_check
      _
    $region11: #{tpu_custom_call.1} parent=1 // pred_check_branch
      %40 = sbr.rel (0) target = $region13
    $region12: #{tpu_custom_call.1} parent=1 // pred_region
      %s42 = ssub.s32 256, 256
      %43 = vsyncadd [#allocation7], %s42
      %s44 = sshll.u32 [#allocation8], 4
      %s45 = int_to_ptr.vmem [resolvable:$true] %s44
      %50 = dma.hbm_to_vmem [thread:$0]  %s2, 256, %s45, [#allocation7], 64, 64, 4
    $region13: #{tpu_custom_call.1} parent=1 // pred_fallthru
      _
    // Predicated region
    $region14: #{tpu_custom_call.1} parent=1 // pred_check
      _
    $region15: #{tpu_custom_call.1} parent=1 // pred_check_branch
      %52 = sbr.rel (0) target = $region17
    $region16: #{tpu_custom_call.1} parent=1 // pred_region
      %s54 = ssub.s32 1024, 1024
      %55 = vsyncadd [#allocation10], %s54
      %s56 = sshll.u32 [#allocation9], 4
      %s57 = int_to_ptr.vmem [resolvable:$true] %s56
      %62 = dma.hbm_to_vmem [thread:$0]  %s3, 1024, %s57, [#allocation10], 64, 64, 4
    $region17: #{tpu_custom_call.1} parent=1 // pred_fallthru
      _
    // Predicated region
    $region18: #{tpu_custom_call.1} parent=1 // pred_check
      _
    $region19: #{tpu_custom_call.1} parent=1 // pred_check_branch
      %64 = sbr.rel (0) target = $region21
    $region20: #{tpu_custom_call.1} parent=1 // pred_region
      %s66 = ssub.s32 1024, 1024
      %67 = vsyncadd [#allocation10], %s66
      %s68 = sshll.u32 [#allocation11], 4
      %s69 = int_to_ptr.vmem [resolvable:$true] %s68
      %74 = dma.hbm_to_vmem [thread:$0]  %s4, 1024, %s69, [#allocation10], 64, 64, 4
    $region21: #{tpu_custom_call.1} parent=1 // pred_fallthru
      _
    // Predicated region
    $region22: #{tpu_custom_call.1} parent=1 // pred_check
      _
    $region23: #{tpu_custom_call.1} parent=1 // pred_check_branch
      %76 = sbr.rel (0) target = $region25
    $region24: #{tpu_custom_call.1} parent=1 // pred_region
      _
    $region25: #{tpu_custom_call.1} parent=1 // pred_fallthru
      _
    // Predicated region
    $region26: #{tpu_custom_call.1} parent=1 // pred_check
      _
    $region27: #{tpu_custom_call.1} parent=1 // pred_check_branch
      %78 = sbr.rel (0) target = $region29
    $region28: #{tpu_custom_call.1} parent=1 // pred_region
      %79 = dma.done [#allocation4], 256
    $region29: #{tpu_custom_call.1} parent=1 // pred_fallthru
      _
    // Predicated region
    $region30: #{tpu_custom_call.1} parent=1 // pred_check
      _
    $region31: #{tpu_custom_call.1} parent=1 // pred_check_branch
      %81 = sbr.rel (0) target = $region33
    $region32: #{tpu_custom_call.1} parent=1 // pred_region
      %82 = dma.done [#allocation7], 1024
    $region33: #{tpu_custom_call.1} parent=1 // pred_fallthru
      _
    // Predicated region
    $region34: #{tpu_custom_call.1} parent=1 // pred_check
      _
    $region35: #{tpu_custom_call.1} parent=1 // pred_check_branch
      %84 = sbr.rel (0) target = $region37
    $region36: #{tpu_custom_call.1} parent=1 // pred_region
      %85 = dma.done [#allocation7], 256
    $region37: #{tpu_custom_call.1} parent=1 // pred_fallthru
      _
    // Predicated region
    $region38: #{tpu_custom_call.1} parent=1 // pred_check
      _
    $region39: #{tpu_custom_call.1} parent=1 // pred_check_branch
      %87 = sbr.rel (0) target = $region41
    $region40: #{tpu_custom_call.1} parent=1 // pred_region
      %88 = dma.done [#allocation10], 1024
    $region41: #{tpu_custom_call.1} parent=1 // pred_fallthru
      _
    // Predicated region
    $region42: #{tpu_custom_call.1} parent=1 // pred_check
      _
    $region43: #{tpu_custom_call.1} parent=1 // pred_check_branch
      %90 = sbr.rel (0) target = $region45
    $region44: #{tpu_custom_call.1} parent=1 // pred_region
      %91 = dma.done [#allocation10], 1024
    $region45: #{tpu_custom_call.1} parent=1 // pred_fallthru
      _
    %p93 = scmp.eq.s32.totalorder 0, 0
    // Predicated region
    $region46: #{tpu_custom_call.1} parent=1 // pred_check
      %p94 = pneg %p93
    $region47: #{tpu_custom_call.1} parent=1 // pred_check_branch
      %96 = sbr.rel (%p94) target = $region49
    $region48: #{tpu_custom_call.1} parent=1 // pred_region
      %97 = vst [vmem:[#allocation2] sm:$0xff] 0.0
      %98 = vst [vmem:[#allocation2 + $0x8] sm:$0xff] 0.0
      %99 = vst [vmem:[#allocation2 + $0x10] sm:$0xff] 0.0
      %100 = vst [vmem:[#allocation2 + $0x18] sm:$0xff] 0.0
    $region49: #{tpu_custom_call.1} parent=1 // pred_fallthru
      _
    %v101 = vld [vmem:[#allocation2] sm:$0xff]
    %v102 = vld [vmem:[#allocation2 + $0x8] sm:$0xff]
    %v103 = vld [vmem:[#allocation2 + $0x10] sm:$0xff]
    %v104 = vld [vmem:[#allocation2 + $0x18] sm:$0xff]
    %v105 = vld [vmem:[#allocation3] sm:$0xf]
    %v106 = vld [vmem:[#allocation3 + $0x4] sm:$0xf]
    %v107 = vld [vmem:[#allocation3 + $0x8] sm:$0xf]
    %v108 = vld [vmem:[#allocation3 + $0xc] sm:$0xf]
    %v109 = vld [vmem:[#allocation6] sm:$0xf]
    %v110 = vld [vmem:[#allocation6 + $0x4] sm:$0xf]
    %v111 = vld [vmem:[#allocation6 + $0x8] sm:$0xf]
    %v112 = vld [vmem:[#allocation6 + $0xc] sm:$0xf]
    %v113 = vld [vmem:[#allocation6 + $0x10] sm:$0xf]
    %v114 = vld [vmem:[#allocation6 + $0x14] sm:$0xf]
    %v115 = vld [vmem:[#allocation6 + $0x18] sm:$0xf]
    %v116 = vld [vmem:[#allocation6 + $0x1c] sm:$0xf]
    %v117 = vld [vmem:[#allocation6 + $0x20] sm:$0xf]
    %v118 = vld [vmem:[#allocation6 + $0x24] sm:$0xf]
    %v119 = vld [vmem:[#allocation6 + $0x28] sm:$0xf]
    %v120 = vld [vmem:[#allocation6 + $0x2c] sm:$0xf]
    %v121 = vld [vmem:[#allocation6 + $0x30] sm:$0xf]
    %v122 = vld [vmem:[#allocation6 + $0x34] sm:$0xf]
    %v123 = vld [vmem:[#allocation6 + $0x38] sm:$0xf]
    %v124 = vld [vmem:[#allocation6 + $0x3c] sm:$0xf]
    %v129 = vunpack.c.l.b16 %v105
    %v130 = vunpack.c.l.b16 %v106
    %v131 = vunpack.c.l.b16 %v107
    %v132 = vunpack.c.l.b16 %v108
    %v133 = vpack.c.b16 %v130, %v129
    %v134 = vpack.c.b16 %v132, %v131
    %v153 = vunpack.c.l.b16 %v109
    %v154 = vunpack.c.l.b16 %v110
    %v155 = vunpack.c.l.b16 %v111
    %v156 = vunpack.c.l.b16 %v112
    %v157 = vunpack.c.l.b16 %v113
    %v158 = vunpack.c.l.b16 %v114
    %v159 = vunpack.c.l.b16 %v115
    %v160 = vunpack.c.l.b16 %v116
    %v161 = vunpack.c.l.b16 %v117
    %v162 = vunpack.c.l.b16 %v118
    %v163 = vunpack.c.l.b16 %v119
    %v164 = vunpack.c.l.b16 %v120
    %v165 = vunpack.c.l.b16 %v121
    %v166 = vunpack.c.l.b16 %v122
    %v167 = vunpack.c.l.b16 %v123
    %v168 = vunpack.c.l.b16 %v124
    %v169 = vpack.c.b16 %v154, %v153
    %v170 = vpack.c.b16 %v156, %v155
    %v171 = vpack.c.b16 %v158, %v157
    %v172 = vpack.c.b16 %v160, %v159
    %v173 = vpack.c.b16 %v162, %v161
    %v174 = vpack.c.b16 %v164, %v163
    %v175 = vpack.c.b16 %v166, %v165
    %v176 = vpack.c.b16 %v168, %v167
    %185 = vmatprep.subr.bf16.mxu0 0
    %186 = vmatpush1.bf16.msra.mxu0 %v169
    %187 = vmatprep.subr.bf16.mxu0 0
    %188 = vmatpush1.bf16.msra.mxu0 %v170
    %189 = vmatprep.subr.bf16.mxu0 0
    %190 = vmatpush1.bf16.msra.mxu0 %v171
    %191 = vmatprep.subr.bf16.mxu0 0
    %192 = vmatpush1.bf16.msra.mxu0 %v172
    %193 = vmatprep.subr.bf16.mxu0 0
    %194 = vmatpush1.bf16.msra.mxu0 %v173
    %195 = vmatprep.subr.bf16.mxu0 0
    %196 = vmatpush1.bf16.msra.mxu0 %v174
    %197 = vmatprep.subr.bf16.mxu0 0
    %198 = vmatpush1.bf16.msra.mxu0 %v175
    %199 = vmatprep.subr.bf16.mxu0 0
    %200 = vmatpush1.bf16.msra.mxu0 %v176
    %201 = vmatprep.subr.bf16.mxu0 0
    %202 = vmatpush1.bf16.msra.mxu0 0
    %203 = vmatprep.subr.bf16.mxu0 0
    %204 = vmatpush1.bf16.msra.mxu0 0
    %205 = vmatprep.subr.bf16.mxu0 0
    %206 = vmatpush1.bf16.msra.mxu0 0
    %207 = vmatprep.subr.bf16.mxu0 0
    %208 = vmatpush1.bf16.msra.mxu0 0
    %209 = vmatprep.subr.bf16.mxu0 0
    %210 = vmatpush1.bf16.msra.mxu0 0
    %211 = vmatprep.subr.bf16.mxu0 0
    %212 = vmatpush1.bf16.msra.mxu0 0
    %213 = vmatprep.subr.bf16.mxu0 0
    %214 = vmatpush1.bf16.msra.mxu0 0
    %215 = vmatprep.subr.bf16.mxu0 0
    %216 = vmatpush1.bf16.msra.mxu0 0
    %217 = vmatprep.mubr.bf16.mxu0 0
    %218 = vmatmul.mubr.bf16.gmra.mrb[0].mxu0 %v133
    %v219 = vpop.f32.mrb[0].mxu0
    %v220 = vadd.f32 0.0, %v219
    %v221 = vpop.f32.mrb[0].mxu0
    %v222 = vpop.f32.mrb[0].mxu0
    %v223 = vadd.f32 0.0, %v222
    %v224 = vpop.f32.mrb[0].mxu0
    %225 = vmatprep.mubr.bf16.mxu0 0
    %226 = vmatmul.mubr.bf16.gmra.mrb[0].mxu0 %v134
    %v227 = vpop.f32.mrb[0].mxu0
    %v228 = vadd.f32 0.0, %v227
    %v229 = vpop.f32.mrb[0].mxu0
    %v230 = vpop.f32.mrb[0].mxu0
    %v231 = vadd.f32 0.0, %v230
    %v232 = vpop.f32.mrb[0].mxu0
    %233 = vdwg.mxu0
    %v234 = vadd.f32 %v101, %v220
    %v235 = vadd.f32 %v102, %v223
    %v236 = vadd.f32 %v103, %v228
    %v237 = vadd.f32 %v104, %v231
    %238 = vst [vmem:[#allocation2] sm:$0xff] %v234
    %239 = vst [vmem:[#allocation2 + $0x8] sm:$0xff] %v235
    %240 = vst [vmem:[#allocation2 + $0x10] sm:$0xff] %v236
    %241 = vst [vmem:[#allocation2 + $0x18] sm:$0xff] %v237
    // Predicated region
    $region50: #{tpu_custom_call.1} parent=1 // pred_check
      %p242 = pneg %p93
    $region51: #{tpu_custom_call.1} parent=1 // pred_check_branch
      %244 = sbr.rel (%p242) target = $region53
    $region52: #{tpu_custom_call.1} parent=1 // pred_region
      %v245 = vld [vmem:[#allocation8] sm:$0xf]
      %v246 = vld [vmem:[#allocation8 + $0x4] sm:$0xf]
      %v247 = vld [vmem:[#allocation8 + $0x8] sm:$0xf]
      %v248 = vld [vmem:[#allocation8 + $0xc] sm:$0xf]
      %v249 = vld [vmem:[#allocation9] sm:$0xf]
      %v250 = vld [vmem:[#allocation9 + $0x4] sm:$0xf]
      %v251 = vld [vmem:[#allocation9 + $0x8] sm:$0xf]
      %v252 = vld [vmem:[#allocation9 + $0xc] sm:$0xf]
      %v253 = vld [vmem:[#allocation9 + $0x10] sm:$0xf]
      %v254 = vld [vmem:[#allocation9 + $0x14] sm:$0xf]
      %v255 = vld [vmem:[#allocation9 + $0x18] sm:$0xf]
      %v256 = vld [vmem:[#allocation9 + $0x1c] sm:$0xf]
      %v257 = vld [vmem:[#allocation9 + $0x20] sm:$0xf]
      %v258 = vld [vmem:[#allocation9 + $0x24] sm:$0xf]
      %v259 = vld [vmem:[#allocation9 + $0x28] sm:$0xf]
      %v260 = vld [vmem:[#allocation9 + $0x2c] sm:$0xf]
      %v261 = vld [vmem:[#allocation9 + $0x30] sm:$0xf]
      %v262 = vld [vmem:[#allocation9 + $0x34] sm:$0xf]
      %v263 = vld [vmem:[#allocation9 + $0x38] sm:$0xf]
      %v264 = vld [vmem:[#allocation9 + $0x3c] sm:$0xf]
      %v265 = vld [vmem:[#allocation2] sm:$0xff]
      %v266 = vld [vmem:[#allocation2 + $0x8] sm:$0xff]
      %v267 = vld [vmem:[#allocation2 + $0x10] sm:$0xff]
      %v268 = vld [vmem:[#allocation2 + $0x18] sm:$0xff]
      %v269 = vpack.c.bf16 %v266, %v265
      %v270 = vpack.c.bf16 %v268, %v267
      %v271 = vld [vmem:[#allocation11] sm:$0xf]
      %v272 = vld [vmem:[#allocation11 + $0x4] sm:$0xf]
      %v273 = vld [vmem:[#allocation11 + $0x8] sm:$0xf]
      %v274 = vld [vmem:[#allocation11 + $0xc] sm:$0xf]
      %v275 = vld [vmem:[#allocation11 + $0x10] sm:$0xf]
      %v276 = vld [vmem:[#allocation11 + $0x14] sm:$0xf]
      %v277 = vld [vmem:[#allocation11 + $0x18] sm:$0xf]
      %v278 = vld [vmem:[#allocation11 + $0x1c] sm:$0xf]
      %v279 = vld [vmem:[#allocation11 + $0x20] sm:$0xf]
      %v280 = vld [vmem:[#allocation11 + $0x24] sm:$0xf]
      %v281 = vld [vmem:[#allocation11 + $0x28] sm:$0xf]
      %v282 = vld [vmem:[#allocation11 + $0x2c] sm:$0xf]
      %v283 = vld [vmem:[#allocation11 + $0x30] sm:$0xf]
      %v284 = vld [vmem:[#allocation11 + $0x34] sm:$0xf]
      %v285 = vld [vmem:[#allocation11 + $0x38] sm:$0xf]
      %v286 = vld [vmem:[#allocation11 + $0x3c] sm:$0xf]
      %v303 = vunpack.c.l.b16 %v271
      %v304 = vunpack.c.l.b16 %v272
      %v305 = vunpack.c.l.b16 %v273
      %v306 = vunpack.c.l.b16 %v274
      %v307 = vunpack.c.l.b16 %v275
      %v308 = vunpack.c.l.b16 %v276
      %v309 = vunpack.c.l.b16 %v277
      %v310 = vunpack.c.l.b16 %v278
      %v311 = vunpack.c.l.b16 %v279
      %v312 = vunpack.c.l.b16 %v280
      %v313 = vunpack.c.l.b16 %v281
      %v314 = vunpack.c.l.b16 %v282
      %v315 = vunpack.c.l.b16 %v283
      %v316 = vunpack.c.l.b16 %v284
      %v317 = vunpack.c.l.b16 %v285
      %v318 = vunpack.c.l.b16 %v286
      %v319 = vpack.c.b16 %v304, %v303
      %v320 = vpack.c.b16 %v306, %v305
      %v321 = vpack.c.b16 %v308, %v307
      %v322 = vpack.c.b16 %v310, %v309
      %v323 = vpack.c.b16 %v312, %v311
      %v324 = vpack.c.b16 %v314, %v313
      %v325 = vpack.c.b16 %v316, %v315
      %v326 = vpack.c.b16 %v318, %v317
      %335 = vmatprep.subr.bf16.mxu0 0
      %336 = vmatpush1.bf16.msra.mxu0 %v319
      %337 = vmatprep.subr.bf16.mxu0 0
      %338 = vmatpush1.bf16.msra.mxu0 %v320
      %339 = vmatprep.subr.bf16.mxu0 0
      %340 = vmatpush1.bf16.msra.mxu0 %v321
      %341 = vmatprep.subr.bf16.mxu0 0
      %342 = vmatpush1.bf16.msra.mxu0 %v322
      %343 = vmatprep.subr.bf16.mxu0 0
      %344 = vmatpush1.bf16.msra.mxu0 %v323
      %345 = vmatprep.subr.bf16.mxu0 0
      %346 = vmatpush1.bf16.msra.mxu0 %v324
      %347 = vmatprep.subr.bf16.mxu0 0
      %348 = vmatpush1.bf16.msra.mxu0 %v325
      %349 = vmatprep.subr.bf16.mxu0 0
      %350 = vmatpush1.bf16.msra.mxu0 %v326
      %351 = vmatprep.subr.bf16.mxu0 0
      %352 = vmatpush1.bf16.msra.mxu0 0
      %353 = vmatprep.subr.bf16.mxu0 0
      %354 = vmatpush1.bf16.msra.mxu0 0
      %355 = vmatprep.subr.bf16.mxu0 0
      %356 = vmatpush1.bf16.msra.mxu0 0
      %357 = vmatprep.subr.bf16.mxu0 0
      %358 = vmatpush1.bf16.msra.mxu0 0
      %359 = vmatprep.subr.bf16.mxu0 0
      %360 = vmatpush1.bf16.msra.mxu0 0
      %361 = vmatprep.subr.bf16.mxu0 0
      %362 = vmatpush1.bf16.msra.mxu0 0
      %363 = vmatprep.subr.bf16.mxu0 0
      %364 = vmatpush1.bf16.msra.mxu0 0
      %365 = vmatprep.subr.bf16.mxu0 0
      %366 = vmatpush1.bf16.msra.mxu0 0
      %367 = vmatprep.mubr.bf16.mxu0 0
      %368 = vmatmul.mubr.bf16.gmra.mrb[0].mxu0 %v269
      %v369 = vpop.f32.mrb[0].mxu0
      %v370 = vadd.f32 0.0, %v369
      %v371 = vpop.f32.mrb[0].mxu0
      %v372 = vpop.f32.mrb[0].mxu0
      %v373 = vadd.f32 0.0, %v372
      %v374 = vpop.f32.mrb[0].mxu0
      %375 = vmatprep.mubr.bf16.mxu0 0
      %376 = vmatmul.mubr.bf16.gmra.mrb[0].mxu0 %v270
      %v377 = vpop.f32.mrb[0].mxu0
      %v378 = vadd.f32 0.0, %v377
      %v379 = vpop.f32.mrb[0].mxu0
      %v380 = vpop.f32.mrb[0].mxu0
      %v381 = vadd.f32 0.0, %v380
      %v382 = vpop.f32.mrb[0].mxu0
      %383 = vdwg.mxu0
      %v388 = vunpack.c.l.b16 %v245
      %v389 = vunpack.c.l.b16 %v246
      %v390 = vunpack.c.l.b16 %v247
      %v391 = vunpack.c.l.b16 %v248
      %v392 = vpack.c.b16 %v389, %v388
      %v393 = vpack.c.b16 %v391, %v390
      %v412 = vunpack.c.l.b16 %v249
      %v413 = vunpack.c.l.b16 %v250
      %v414 = vunpack.c.l.b16 %v251
      %v415 = vunpack.c.l.b16 %v252
      %v416 = vunpack.c.l.b16 %v253
      %v417 = vunpack.c.l.b16 %v254
      %v418 = vunpack.c.l.b16 %v255
      %v419 = vunpack.c.l.b16 %v256
      %v420 = vunpack.c.l.b16 %v257
      %v421 = vunpack.c.l.b16 %v258
      %v422 = vunpack.c.l.b16 %v259
      %v423 = vunpack.c.l.b16 %v260
      %v424 = vunpack.c.l.b16 %v261
      %v425 = vunpack.c.l.b16 %v262
      %v426 = vunpack.c.l.b16 %v263
      %v427 = vunpack.c.l.b16 %v264
      %v428 = vpack.c.b16 %v413, %v412
      %v429 = vpack.c.b16 %v415, %v414
      %v430 = vpack.c.b16 %v417, %v416
      %v431 = vpack.c.b16 %v419, %v418
      %v432 = vpack.c.b16 %v421, %v420
      %v433 = vpack.c.b16 %v423, %v422
      %v434 = vpack.c.b16 %v425, %v424
      %v435 = vpack.c.b16 %v427, %v426
      %444 = vmatprep.subr.bf16.mxu0 0
      %445 = vmatpush1.bf16.msra.mxu0 %v428
      %446 = vmatprep.subr.bf16.mxu0 0
      %447 = vmatpush1.bf16.msra.mxu0 %v429
      %448 = vmatprep.subr.bf16.mxu0 0
      %449 = vmatpush1.bf16.msra.mxu0 %v430
      %450 = vmatprep.subr.bf16.mxu0 0
      %451 = vmatpush1.bf16.msra.mxu0 %v431
      %452 = vmatprep.subr.bf16.mxu0 0
      %453 = vmatpush1.bf16.msra.mxu0 %v432
      %454 = vmatprep.subr.bf16.mxu0 0
      %455 = vmatpush1.bf16.msra.mxu0 %v433
      %456 = vmatprep.subr.bf16.mxu0 0
      %457 = vmatpush1.bf16.msra.mxu0 %v434
      %458 = vmatprep.subr.bf16.mxu0 0
      %459 = vmatpush1.bf16.msra.mxu0 %v435
      %460 = vmatprep.subr.bf16.mxu0 0
      %461 = vmatpush1.bf16.msra.mxu0 0
      %462 = vmatprep.subr.bf16.mxu0 0
      %463 = vmatpush1.bf16.msra.mxu0 0
      %464 = vmatprep.subr.bf16.mxu0 0
      %465 = vmatpush1.bf16.msra.mxu0 0
      %466 = vmatprep.subr.bf16.mxu0 0
      %467 = vmatpush1.bf16.msra.mxu0 0
      %468 = vmatprep.subr.bf16.mxu0 0
      %469 = vmatpush1.bf16.msra.mxu0 0
      %470 = vmatprep.subr.bf16.mxu0 0
      %471 = vmatpush1.bf16.msra.mxu0 0
      %472 = vmatprep.subr.bf16.mxu0 0
      %473 = vmatpush1.bf16.msra.mxu0 0
      %474 = vmatprep.subr.bf16.mxu0 0
      %475 = vmatpush1.bf16.msra.mxu0 0
      %476 = vmatprep.mubr.bf16.mxu0 0
      %477 = vmatmul.mubr.bf16.gmra.mrb[0].mxu0 %v392
      %v478 = vpop.f32.mrb[0].mxu0
      %v479 = vadd.f32 %v370, %v478
      %v480 = vpop.f32.mrb[0].mxu0
      %v481 = vpop.f32.mrb[0].mxu0
      %v482 = vadd.f32 %v373, %v481
      %v483 = vpop.f32.mrb[0].mxu0
      %484 = vmatprep.mubr.bf16.mxu0 0
      %485 = vmatmul.mubr.bf16.gmra.mrb[0].mxu0 %v393
      %v486 = vpop.f32.mrb[0].mxu0
      %v487 = vadd.f32 %v378, %v486
      %v488 = vpop.f32.mrb[0].mxu0
      %v489 = vpop.f32.mrb[0].mxu0
      %v490 = vadd.f32 %v381, %v489
      %v491 = vpop.f32.mrb[0].mxu0
      %492 = vdwg.mxu0
      %v493 = vld [vmem:[%s5] sm:$0x1]
      %v495 = vlaneseq
      %v496 = vshrl.u32 %v495, 7
      %v497 = vsub.s32 0, %v496
      %v498 = vrot.slane %v493, %v497
      %v500 = vadd.f32 %v479, %v498
      %v501 = vadd.f32 %v482, %v498
      %v502 = vadd.f32 %v487, %v498
      %v503 = vadd.f32 %v490, %v498
      %v504 = vmax.f32 %v500, 0.0
      %v505 = vmax.f32 %v501, 0.0
      %v506 = vmax.f32 %v502, 0.0
      %v507 = vmax.f32 %v503, 0.0
      %v508 = vpack.c.bf16 %v505, %v504
      %v509 = vpack.c.bf16 %v507, %v506
      %v512 = vunpack.c.l.b16 %v508
      %v513 = vunpack.c.h.b16 %v508
      %v514 = vunpack.c.l.b16 %v509
      %v515 = vunpack.c.h.b16 %v509
      %v516 = vpack.c.b16 %v512, %v512
      %v517 = vpack.c.b16 %v513, %v513
      %v518 = vpack.c.b16 %v514, %v514
      %v519 = vpack.c.b16 %v515, %v515
      %524 = vst [vmem:[#allocation12] sm:$0xf] %v516
      %525 = vst [vmem:[#allocation12 + $0x4] sm:$0xf] %v517
      %526 = vst [vmem:[#allocation12 + $0x8] sm:$0xf] %v518
      %527 = vst [vmem:[#allocation12 + $0xc] sm:$0xf] %v519
    $region53: #{tpu_custom_call.1} parent=1 // pred_fallthru
      _
    // Predicated region
    $region54: #{tpu_custom_call.1} parent=1 // pred_check
      _
    $region55: #{tpu_custom_call.1} parent=1 // pred_check_branch
      %529 = sbr.rel (0) target = $region57
    $region56: #{tpu_custom_call.1} parent=1 // pred_region
      %s531 = ssub.s32 256, 256
      %532 = vsyncadd [#allocation5], %s531
      %s533 = sshll.u32 [#allocation12], 4
      %s534 = int_to_ptr.vmem [resolvable:$true] %s533
      %539 = dma.vmem_to_hbm [thread:$0]  %s534, 256, %s6, [#allocation5], 64, 64, 4
    $region57: #{tpu_custom_call.1} parent=1 // pred_fallthru
      _
    // Predicated region
    $region58: #{tpu_custom_call.1} parent=1 // pred_check
      _
    $region59: #{tpu_custom_call.1} parent=1 // pred_check_branch
      %541 = sbr.rel (0) target = $region61
    $region60: #{tpu_custom_call.1} parent=1 // pred_region
      %542 = dma.done [#allocation5], 256
    $region61: #{tpu_custom_call.1} parent=1 // pred_fallthru
      _
    %543 = vsyncpa [#allocation4], 1
    %544 = vsyncpa [#allocation7], 1
    %545 = vsyncpa [#allocation10], 1
    %546 = vsyncpa [#allocation5], 1

</llo_original>
